<compile_context>
chip_gen: v5e
topology: v5e:2x2
jax: 0.10.0
libtpu: 0.0.40
codegen_flags: <defaults>
</compile_context>

<pallas_src>
import functools

import jax
import jax.numpy as jnp
from jax.experimental import pallas as pl
from jax.experimental.pallas import tpu as pltpu


# ---------------------------------------------------------------------------
# Kernel: one batch tile of the whole forward pass.
# ---------------------------------------------------------------------------
def transformer2_kernel(
    enc_ref,    # (Bt, 192)
    p_ref,      # (Bt, 3)
    g_ref,      # (Bt, Gd)        Gd in {1, 32}; broadcast in-kernel
    lf_ref,     # (Bt, A2*116)    dominant stream (f32 or bf16)
    w1p_ref,    # (192, 32)       w1 in cols 0:16, zeros elsewhere
    wpp_ref,    # (3, 32)         wp in cols 16:32, zeros elsewhere
    bxp_ref,    # (1, 32)         [b1 || bp]
    wlr_ref,    # (A2*116, 32)    wl replicated A2 times along rows
    bl_ref,     # (1, 32)
    w2_ref,     # (32, 2)
    b2_ref,     # (1, 2)
    out_ref,    # (Bt, 2)
):
    # dense_1 / fc_p: two MXU ops whose zero-padded weights place the results
    # directly in lanes 0:16 / 16:32 — equivalent to cat([x, p], dim=1).
    y = jnp.dot(enc_ref[...], w1p_ref[...], preferred_element_type=jnp.float32)
    y = y + jnp.dot(p_ref[...], wpp_ref[...], preferred_element_type=jnp.float32)
    y = y + bxp_ref[...]

    # l.sum(dim=1) @ wl  ==  l_flat @ concat([wl]*A2, axis=0)
    # Reduction folded into the MXU; bf16 lf feeds straight in (f32 accumulate).
    ll = jnp.dot(lf_ref[...], wlr_ref[...], preferred_element_type=jnp.float32)
    ll = ll + bl_ref[...]

    # f_o = g * cat([x, p]) + (1 - g) * l   (g broadcasts from (Bt,1) or (Bt,32))
    g = g_ref[...].astype(jnp.float32)
    f_o = g * y + (1.0 - g) * ll

    # dense_2. Last dim of 2 => masked vst; accepted (output bytes are tiny).
    out = jnp.dot(f_o, w2_ref[...], preferred_element_type=jnp.float32)
    out_ref[...] = (out + b2_ref[...]).astype(out_ref.dtype)


# ---------------------------------------------------------------------------
# Once-per-model parameter preparation (hoisted out of the forward trace).
# ---------------------------------------------------------------------------
def prepare_params(params, a2):
    w1, b1 = params["w1"], params["b1"]       # (192, 16), (1, 16)
    wp, bp = params["wp"], params["bp"]       # (3, 16),   (1, 16)
    n1, n2 = w1.shape[1], wp.shape[1]         # 16, 16
    w1p = jnp.pad(w1, ((0, 0), (0, n2)))      # (192, 32): cols 0:16 = w1
    wpp = jnp.pad(wp, ((0, 0), (n1, 0)))      # (3, 32):   cols 16:32 = wp
    bxp = jnp.concatenate([b1, bp], axis=1)   # (1, 32)
    wl_rep = jnp.concatenate([params["wl"]] * a2, axis=0)  # (a2*116, 32)
    return dict(w1p=w1p, wpp=wpp, bxp=bxp, wl_rep=wl_rep,
                bl=params["bl"], w2=params["w2"], b2=params["b2"])


# ---------------------------------------------------------------------------
# Batch-tile selection and VMEM budget (computed from actual buffer sizes).
# ---------------------------------------------------------------------------
def _pick_bt(B, block_b):
    bt = min(B, block_b)
    # Ensure n_blk >= 2 when possible so the "parallel" batch axis actually
    # spans both TensorCores on v7x (no-op on single-TC v5e/v6e).
    if bt >= 16 and pl.cdiv(B, bt) < 2:
        bt = (bt + 1) // 2
    if bt >= 8:
        bt = (bt // 8) * 8                    # sublane-aligned tile
    return max(bt, 1)


def _vmem_limit_bytes(bt, gdim, lflat, l_itemsize):
    # streamed per-block inputs/outputs, double-buffered
    stream = bt * (192 * 4 + 3 * 4 + gdim * 4 + lflat * l_itemsize + 2 * 4)
    weights = 4 * (192 * 32 + 3 * 32 + 32 + lflat * 32 + 32 + 32 * 2 + 2)
    budget = 2 * stream + 2 * weights + (2 << 20)   # + headroom
    return int(min(max(budget, 4 << 20), 48 << 20))


# ---------------------------------------------------------------------------
# Forward wrapper: no HBM-materializing concat/pad/cast on the large streams.
# ---------------------------------------------------------------------------
def transformer2_forward(p, enc_inputs, g, f, l, prepared, *, block_b=1024):
    """`f` is accepted (to match the PyTorch signature) but unused.

    `prepared` comes from prepare_params(); `l` is used in whatever dtype it
    arrives in (pass bf16 only if it is produced in bf16 upstream).
    """
    del f  # unused by the reference forward pass
    B = enc_inputs.shape[0]
    A2, LD = l.shape[1], l.shape[2]
    lflat = A2 * LD

    l_flat = l.reshape(B, lflat)              # free reshape for row-major l
    g = jnp.asarray(g)
    if g.ndim == 1:
        g = g.reshape(B, 1)                   # natural shape; broadcast in-kernel
    gdim = g.shape[1]

    bt = _pick_bt(B, block_b)
    n_blk = pl.cdiv(B, bt)                    # ragged last block handled by Pallas

    row2 = lambda i: (i, 0)
    const2 = lambda i: (0, 0)                 # weights/biases stay VMEM-resident

    out = pl.pallas_call(
        transformer2_kernel,
        out_shape=jax.ShapeDtypeStruct((B, 2), jnp.float32),
        grid=(n_blk,),
        in_specs=[
            pl.BlockSpec((bt, enc_inputs.shape[1]), row2),   # enc_inputs
            pl.BlockSpec((bt, p.shape[1]), row2),            # p
            pl.BlockSpec((bt, gdim), row2),                  # g
            pl.BlockSpec((bt, lflat), row2),                 # l (dominant stream)
            pl.BlockSpec(prepared["w1p"].shape, const2),
            pl.BlockSpec(prepared["wpp"].shape, const2),
            pl.BlockSpec(prepared["bxp"].shape, const2),
            pl.BlockSpec(prepared["wl_rep"].shape, const2),
            pl.BlockSpec(prepared["bl"].shape, const2),
            pl.BlockSpec(prepared["w2"].shape, const2),
            pl.BlockSpec(prepared["b2"].shape, const2),
        ],
        out_specs=pl.BlockSpec((bt, 2), row2),
        compiler_params=pltpu.CompilerParams(
            dimension_semantics=("parallel",),   # megacore sharding on v7x
            vmem_limit_bytes=_vmem_limit_bytes(bt, gdim, lflat, l_flat.dtype.itemsize),
        ),
    )(enc_inputs, p, g, l_flat,
      prepared["w1p"], prepared["wpp"], prepared["bxp"],
      prepared["wl_rep"], prepared["bl"], prepared["w2"], prepared["b2"])

    return out


# ---------------------------------------------------------------------------
# Deterministic parameter init (shapes from the module's __init__).
# Stored as (in_features, out_features); biases as (1, out_features).
# ---------------------------------------------------------------------------
def init_params(key):
    keys = jax.random.split(key, 8)

    def lin(kw, kb, fan_in, fan_out):
        bound = 1.0 / jnp.sqrt(fan_in)
        w = jax.random.uniform(kw, (fan_in, fan_out), jnp.float32, -bound, bound)
        b = jax.random.uniform(kb, (1, fan_out), jnp.float32, -bound, bound)
        return w, b

    w1, b1 = lin(keys[0], keys[1], 192, 16)   # dense_1
    wp, bp = lin(keys[2], keys[3], 3, 16)     # fc_p
    wl, bl = lin(keys[4], keys[5], 116, 32)   # l
    w2, b2 = lin(keys[6], keys[7], 32, 2)     # dense_2
    return dict(w1=w1, b1=b1, wp=wp, bp=bp, wl=wl, bl=bl, w2=w2, b2=b2)


def reference_forward(p, enc_inputs, g, f, l, params):
    """Pure-JAX reference for correctness checking."""
    del f
    x = enc_inputs @ params["w1"] + params["b1"]
    pp = p @ params["wp"] + params["bp"]
    ll = l.astype(jnp.float32).sum(axis=1) @ params["wl"] + params["bl"]
    cat = jnp.concatenate([x, pp], axis=1)
    f_o = g * cat + (1.0 - g) * ll
    return f_o @ params["w2"] + params["b2"]


if __name__ == "__main__":
    key = jax.random.PRNGKey(0)
    kp, kenc, kg, kf, kl, kparams = jax.random.split(key, 6)

    A2 = 4
    params = init_params(kparams)
    prepared = prepare_params(params, A2)

    # ---- test 1: f32, B divisible by the tile (grid=(2,)) ----
    B = 16
    p = jax.random.normal(kp, (B, 3), jnp.float32)
    enc_inputs = jax.random.normal(kenc, (B, 192), jnp.float32)
    g = jax.random.uniform(kg, (B, 32), jnp.float32)
    f = jax.random.normal(kf, (B, 5), jnp.float32)     # unused by forward
    l = jax.random.normal(kl, (B, A2, 116), jnp.float32)

    ref = reference_forward(p, enc_inputs, g, f, l, params)
    out = transformer2_forward(p, enc_inputs, g, f, l, prepared, block_b=8)
    out = jax.block_until_ready(out)
    assert out.shape == (B, 2)
    assert jnp.allclose(out, ref, atol=1e-4, rtol=1e-4), "f32 mismatch vs JAX reference"

    # ---- test 2: ragged last block (B % bt != 0), masked stores ----
    Br = 20
    kp2, kenc2, kg2, kl2 = jax.random.split(jax.random.PRNGKey(1), 4)
    p2 = jax.random.normal(kp2, (Br, 3), jnp.float32)
    enc2 = jax.random.normal(kenc2, (Br, 192), jnp.float32)
    g2 = jax.random.uniform(kg2, (Br, 32), jnp.float32)
    l2 = jax.random.normal(kl2, (Br, A2, 116), jnp.float32)
    ref2 = reference_forward(p2, enc2, g2, None, l2, params)
    out2 = transformer2_forward(p2, enc2, g2, None, l2, prepared, block_b=8)
    out2 = jax.block_until_ready(out2)
    assert out2.shape == (Br, 2)
    assert jnp.allclose(out2, ref2, atol=1e-4, rtol=1e-4), "ragged-batch mismatch"

    # ---- test 3: l produced upstream in bf16 (no wrapper cast; f32 accumulate) ----
    l_bf16 = l.astype(jnp.bfloat16)            # simulates an upstream bf16 producer
    ref_bf = reference_forward(p, enc_inputs, g, f, l_bf16, params)
    out_bf = transformer2_forward(p, enc_inputs, g, f, l_bf16, prepared, block_b=8)
    out_bf = jax.block_until_ready(out_bf)
    assert out_bf.shape == (B, 2)
    assert jnp.allclose(out_bf, ref_bf, atol=2e-2, rtol=2e-2), "bf16-l path mismatch"

    print("KERNEL_OK")
</pallas_src>

<mosaic_0001>
module attributes {stable_mosaic.version = 11 : i64} {
  func.func @transformer2_kernel(%arg0: i32, %arg1: memref<8x192xf32, #tpu.memory_space<vmem>>, %arg2: memref<8x3xf32, #tpu.memory_space<vmem>>, %arg3: memref<8x32xf32, #tpu.memory_space<vmem>>, %arg4: memref<8x464xf32, #tpu.memory_space<vmem>>, %arg5: memref<192x32xf32, #tpu.memory_space<vmem>>, %arg6: memref<3x32xf32, #tpu.memory_space<vmem>>, %arg7: memref<1x32xf32, #tpu.memory_space<vmem>>, %arg8: memref<464x32xf32, #tpu.memory_space<vmem>>, %arg9: memref<1x32xf32, #tpu.memory_space<vmem>>, %arg10: memref<32x2xf32, #tpu.memory_space<vmem>>, %arg11: memref<1x2xf32, #tpu.memory_space<vmem>>, %arg12: memref<8x2xf32, #tpu.memory_space<vmem>>) attributes {dimension_semantics = [#tpu.dimension_semantics<parallel>], iteration_bounds = array<i64: 2>, scalar_prefetch = 0 : i64, scratch_operands = 0 : i64, tpu.core_type = #tpu.core_type<tc>, window_params = [{transform_indices = @transform_0, window_bounds = array<i64: 8, 192>}, {transform_indices = @transform_1, window_bounds = array<i64: 8, 3>}, {transform_indices = @transform_2, window_bounds = array<i64: 8, 32>}, {transform_indices = @transform_3, window_bounds = array<i64: 8, 464>}, {pipeline_mode = #tpu.pipeline_mode<synchronous>, transform_indices = @transform_4, window_bounds = array<i64: 192, 32>}, {pipeline_mode = #tpu.pipeline_mode<synchronous>, transform_indices = @transform_5, window_bounds = array<i64: 3, 32>}, {pipeline_mode = #tpu.pipeline_mode<synchronous>, transform_indices = @transform_6, window_bounds = array<i64: 1, 32>}, {pipeline_mode = #tpu.pipeline_mode<synchronous>, transform_indices = @transform_7, window_bounds = array<i64: 464, 32>}, {pipeline_mode = #tpu.pipeline_mode<synchronous>, transform_indices = @transform_8, window_bounds = array<i64: 1, 32>}, {pipeline_mode = #tpu.pipeline_mode<synchronous>, transform_indices = @transform_9, window_bounds = array<i64: 32, 2>}, {pipeline_mode = #tpu.pipeline_mode<synchronous>, transform_indices = @transform_10, window_bounds = array<i64: 1, 2>}, {transform_indices = @transform_11, window_bounds = array<i64: 8, 2>}]} {
    %c0 = arith.constant 0 : index
    %c0_0 = arith.constant 0 : index
    %0 = vector.load %arg1[%c0, %c0_0] : memref<8x192xf32, #tpu.memory_space<vmem>>, vector<8x192xf32>
    %c0_1 = arith.constant 0 : index
    %c0_2 = arith.constant 0 : index
    %1 = vector.load %arg5[%c0_1, %c0_2] : memref<192x32xf32, #tpu.memory_space<vmem>>, vector<192x32xf32>
    %cst = arith.constant dense<0.000000e+00> : vector<8x32xf32>
    %2 = tpu.matmul %0, %1, %cst {dimension_numbers = #tpu.dot_dimension_numbers<[1], [0], [0], [1], [0, 0, 1, 1], [], []>} : vector<8x192xf32>, vector<192x32xf32>, vector<8x32xf32> -> vector<8x32xf32>
    %c0_3 = arith.constant 0 : index
    %c0_4 = arith.constant 0 : index
    %3 = vector.load %arg2[%c0_3, %c0_4] : memref<8x3xf32, #tpu.memory_space<vmem>>, vector<8x3xf32>
    %c0_5 = arith.constant 0 : index
    %c0_6 = arith.constant 0 : index
    %4 = vector.load %arg6[%c0_5, %c0_6] : memref<3x32xf32, #tpu.memory_space<vmem>>, vector<3x32xf32>
    %cst_7 = arith.constant dense<0.000000e+00> : vector<8x32xf32>
    %5 = tpu.matmul %3, %4, %cst_7 {dimension_numbers = #tpu.dot_dimension_numbers<[1], [0], [0], [1], [0, 0, 1, 1], [], []>} : vector<8x3xf32>, vector<3x32xf32>, vector<8x32xf32> -> vector<8x32xf32>
    %6 = arith.addf %2, %5 : vector<8x32xf32>
    %c0_8 = arith.constant 0 : index
    %c0_9 = arith.constant 0 : index
    %7 = vector.load %arg7[%c0_8, %c0_9] : memref<1x32xf32, #tpu.memory_space<vmem>>, vector<1x32xf32>
    %8 = vector.broadcast %7 : vector<1x32xf32> to vector<8x32xf32>
    %9 = arith.addf %6, %8 : vector<8x32xf32>
    %c0_10 = arith.constant 0 : index
    %c0_11 = arith.constant 0 : index
    %10 = vector.load %arg4[%c0_10, %c0_11] : memref<8x464xf32, #tpu.memory_space<vmem>>, vector<8x464xf32>
    %c0_12 = arith.constant 0 : index
    %c0_13 = arith.constant 0 : index
    %11 = vector.load %arg8[%c0_12, %c0_13] : memref<464x32xf32, #tpu.memory_space<vmem>>, vector<464x32xf32>
    %cst_14 = arith.constant dense<0.000000e+00> : vector<8x32xf32>
    %12 = tpu.matmul %10, %11, %cst_14 {dimension_numbers = #tpu.dot_dimension_numbers<[1], [0], [0], [1], [0, 0, 1, 1], [], []>} : vector<8x464xf32>, vector<464x32xf32>, vector<8x32xf32> -> vector<8x32xf32>
    %c0_15 = arith.constant 0 : index
    %c0_16 = arith.constant 0 : index
    %13 = vector.load %arg9[%c0_15, %c0_16] : memref<1x32xf32, #tpu.memory_space<vmem>>, vector<1x32xf32>
    %14 = vector.broadcast %13 : vector<1x32xf32> to vector<8x32xf32>
    %15 = arith.addf %12, %14 : vector<8x32xf32>
    %c0_17 = arith.constant 0 : index
    %c0_18 = arith.constant 0 : index
    %16 = vector.load %arg3[%c0_17, %c0_18] : memref<8x32xf32, #tpu.memory_space<vmem>>, vector<8x32xf32>
    %17 = arith.mulf %16, %9 : vector<8x32xf32>
    %cst_19 = arith.constant 1.000000e+00 : f32
    %18 = vector.broadcast %cst_19 : f32 to vector<8x32xf32>
    %19 = arith.subf %18, %16 : vector<8x32xf32>
    %20 = arith.mulf %19, %15 : vector<8x32xf32>
    %21 = arith.addf %17, %20 : vector<8x32xf32>
    %c0_20 = arith.constant 0 : index
    %c0_21 = arith.constant 0 : index
    %22 = vector.load %arg10[%c0_20, %c0_21] : memref<32x2xf32, #tpu.memory_space<vmem>>, vector<32x2xf32>
    %cst_22 = arith.constant dense<0.000000e+00> : vector<8x2xf32>
    %23 = tpu.matmul %21, %22, %cst_22 {dimension_numbers = #tpu.dot_dimension_numbers<[1], [0], [0], [1], [0, 0, 1, 1], [], []>} : vector<8x32xf32>, vector<32x2xf32>, vector<8x2xf32> -> vector<8x2xf32>
    %c0_23 = arith.constant 0 : index
    %c0_24 = arith.constant 0 : index
    %24 = vector.load %arg11[%c0_23, %c0_24] : memref<1x2xf32, #tpu.memory_space<vmem>>, vector<1x2xf32>
    %25 = vector.broadcast %24 : vector<1x2xf32> to vector<8x2xf32>
    %26 = arith.addf %23, %25 : vector<8x2xf32>
    %c0_25 = arith.constant 0 : index
    %c0_26 = arith.constant 0 : index
    %27 = vector.load %arg12[%c0_25, %c0_26] : memref<8x2xf32, #tpu.memory_space<vmem>>, vector<8x2xf32>
    tpu.vector_store %arg12[%c0_25, %c0_26], %26 {strides = array<i32>} : memref<8x2xf32, #tpu.memory_space<vmem>>, vector<8x2xf32>,
    return
  }
  func.func @transform_0(%arg0: i32) -> (i32, i32) {
    %c0_i32 = arith.constant 0 : i32
    %c0_i32_0 = arith.constant 0 : i32
    return %arg0, %c0_i32 : i32, i32
  }
  func.func @transform_1(%arg0: i32) -> (i32, i32) {
    %c0_i32 = arith.constant 0 : i32
    %c0_i32_0 = arith.constant 0 : i32
    return %arg0, %c0_i32 : i32, i32
  }
  func.func @transform_2(%arg0: i32) -> (i32, i32) {
    %c0_i32 = arith.constant 0 : i32
    %c0_i32_0 = arith.constant 0 : i32
    return %arg0, %c0_i32 : i32, i32
  }
  func.func @transform_3(%arg0: i32) -> (i32, i32) {
    %c0_i32 = arith.constant 0 : i32
    %c0_i32_0 = arith.constant 0 : i32
    return %arg0, %c0_i32 : i32, i32
  }
  func.func @transform_4(%arg0: i32) -> (i32, i32) {
    %c0_i32 = arith.constant 0 : i32
    %c0_i32_0 = arith.constant 0 : i32
    %c0_i32_1 = arith.constant 0 : i32
    return %c0_i32, %c0_i32_0 : i32, i32
  }
  func.func @transform_5(%arg0: i32) -> (i32, i32) {
    %c0_i32 = arith.constant 0 : i32
    %c0_i32_0 = arith.constant 0 : i32
    %c0_i32_1 = arith.constant 0 : i32
    return %c0_i32, %c0_i32_0 : i32, i32
  }
  func.func @transform_6(%arg0: i32) -> (i32, i32) {
    %c0_i32 = arith.constant 0 : i32
    %c0_i32_0 = arith.constant 0 : i32
    %c0_i32_1 = arith.constant 0 : i32
    return %c0_i32, %c0_i32_0 : i32, i32
  }
  func.func @transform_7(%arg0: i32) -> (i32, i32) {
    %c0_i32 = arith.constant 0 : i32
    %c0_i32_0 = arith.constant 0 : i32
    %c0_i32_1 = arith.constant 0 : i32
    return %c0_i32, %c0_i32_0 : i32, i32
  }
  func.func @transform_8(%arg0: i32) -> (i32, i32) {
    %c0_i32 = arith.constant 0 : i32
    %c0_i32_0 = arith.constant 0 : i32
    %c0_i32_1 = arith.constant 0 : i32
    return %c0_i32, %c0_i32_0 : i32, i32
  }
  func.func @transform_9(%arg0: i32) -> (i32, i32) {
    %c0_i32 = arith.constant 0 : i32
    %c0_i32_0 = arith.constant 0 : i32
    %c0_i32_1 = arith.constant 0 : i32
    return %c0_i32, %c0_i32_0 : i32, i32
  }
  func.func @transform_10(%arg0: i32) -> (i32, i32) {
    %c0_i32 = arith.constant 0 : i32
    %c0_i32_0 = arith.constant 0 : i32
    %c0_i32_1 = arith.constant 0 : i32
    return %c0_i32, %c0_i32_0 : i32, i32
  }
  func.func @transform_11(%arg0: i32) -> (i32, i32) {
    %c0_i32 = arith.constant 0 : i32
    %c0_i32_0 = arith.constant 0 : i32
    return %arg0, %c0_i32 : i32, i32
  }
}

</mosaic_0001>

<llo_original>
// kernel: tpu_custom_call.1
$region0: #{tpu_custom_call.1}
  #allocation0 [shape = 'u32[]', space=smem, size = 0x4, offset = 0x4, fixed_abs, tag = 'smem constant byte address 0x4 - core index']
  #allocation1 [shape = 'u32[72,128]{1,0:T(1,128)}', space=vmem, size = 0x9000, scoped, tag = 'internal scratch']
  %s0 = inlined_call_operand.vmem [shape: f32[16,192], index: 0, kind: input, shape index: {}]
  %s1 = inlined_call_operand.vmem [shape: f32[16,3], index: 1, kind: input, shape index: {}]
  %s2 = inlined_call_operand.vmem [shape: f32[16,32], index: 2, kind: input, shape index: {}]
  %s3 = inlined_call_operand.vmem [shape: f32[16,464], index: 3, kind: input, shape index: {}]
  %s4 = inlined_call_operand.vmem [shape: f32[192,32], index: 4, kind: input, shape index: {}]
  %s5 = inlined_call_operand.vmem [shape: f32[3,32], index: 5, kind: input, shape index: {}]
  %s6 = inlined_call_operand.vmem [shape: f32[1,32], index: 6, kind: input, shape index: {}]
  %s7 = inlined_call_operand.vmem [shape: f32[464,32], index: 7, kind: input, shape index: {}]
  %s8 = inlined_call_operand.vmem [shape: f32[1,32], index: 8, kind: input, shape index: {}]
  %s9 = inlined_call_operand.vmem [shape: f32[32,2], index: 9, kind: input, shape index: {}]
  %s10 = inlined_call_operand.vmem [shape: f32[1,2], index: 10, kind: input, shape index: {}]
  %s11 = inlined_call_operand.vmem [shape: f32[16,2], index: 11, kind: output, shape index: {}]
  %s12 = sld [smem:[#allocation0]]
  $region77: #{tpu_custom_call.1} parent=0
    _
  %s14 = ssub.s32 1, %s12
  %s15 = scalar_select 0, %s14, %s12
  loop: start=0, step=1, limit=4
  $region2: #{tpu_custom_call.1} parent=0 // loop_pre_header
    _
  $region3: #{tpu_custom_call.1} parent=0 // loop_header
    %s17 = sphi 0, %s21
    %p18 = scmp.ge.s32.totalorder %s17, 4
    %s27 = sphi 0, %s29
    %s30 = sphi 0, %s27
    %s31 = sphi 0, %s30
    %s47 = sphi 0, %s31
    %s53 = sphi 0, %s55
    %s56 = sphi 0, %s53
    %s57 = sphi 0, %s56
    %s73 = sphi 0, %s57
    %s79 = sphi 0, %s81
    %s82 = sphi 0, %s79
    %s83 = sphi 0, %s82
    %s99 = sphi 0, %s83
    %s105 = sphi 0, %s107
    %s108 = sphi 0, %s105
    %s109 = sphi 0, %s108
    %s125 = sphi 0, %s109
    %s129 = sphi 0, %s129
    %s131 = sphi 0, %s129
    %s132 = sphi 0, %s131
    %s146 = sphi 0, %s132
    %s150 = sphi 0, %s150
    %s152 = sphi 0, %s150
    %s153 = sphi 0, %s152
    %s167 = sphi 0, %s153
    %s171 = sphi 0, %s171
    %s173 = sphi 0, %s171
    %s174 = sphi 0, %s173
    %s188 = sphi 0, %s174
    %s192 = sphi 0, %s192
    %s194 = sphi 0, %s192
    %s195 = sphi 0, %s194
    %s209 = sphi 0, %s195
    %s213 = sphi 0, %s213
    %s215 = sphi 0, %s213
    %s216 = sphi 0, %s215
    %s230 = sphi 0, %s216
    %s234 = sphi 0, %s234
    %s236 = sphi 0, %s234
    %s237 = sphi 0, %s236
    %s251 = sphi 0, %s237
    %s255 = sphi 0, %s255
    %s257 = sphi 0, %s255
    %s258 = sphi 0, %s257
    %s272 = sphi 0, %s258
    %s278 = sphi 0, %s280
    %s281 = sphi 0, %s278
    %s282 = sphi 0, %s281
    %s298 = sphi 0, %s282
  $region4: #{tpu_custom_call.1} parent=0 // loop_header_branch
    %20 = sbr.rel (%p18) target = $region8
  $region5: #{tpu_custom_call.1} parent=0 // loop_body
    %s22 = ssub.s32 %s17, 1
    %s23 = ssub.s32 %s17, 2
    %s24 = sadd.s32 %s17, 1
    %s25 = ssub.s32 %s17, %s24
    %p26 = scmp.eq.s32.totalorder %s25, 0
    %s28 = sadd.s32 %s27, 1
    %s29 = scalar_select %p26, %s27, %s28
    %p32 = pneg %p26
    %p33 = scmp.eq.s32.totalorder %s17, 1
    %p34 = por %p32, %p33
    %p35 = scmp.ne.s32.totalorder %s27, %s30
    %p36 = scmp.eq.s32.totalorder %s17, 0
    %p37 = por %p35, %p36
    %p38 = scmp.ne.s32.totalorder %s27, %s30
    %p39 = scmp.eq.s32.totalorder %s22, 1
    %p40 = por %p38, %p39
    %p41 = scmp.ne.s32.totalorder %s30, %s31
    %p42 = scmp.eq.s32.totalorder %s22, 0
    %p43 = por %p41, %p42
    %p44 = scmp.ne.s32.totalorder %s30, %s31
    %p45 = scmp.eq.s32.totalorder %s23, 1
    %p46 = por %p44, %p45
    %p48 = scmp.ne.s32.totalorder %s31, %s47
    %p49 = scmp.eq.s32.totalorder %s23, 0
    %p50 = por %p48, %p49
    %s51 = ssub.s32 %s17, %s24
    %p52 = scmp.eq.s32.totalorder %s51, 0
    %s54 = sadd.s32 %s53, 1
    %s55 = scalar_select %p52, %s53, %s54
    %p58 = pneg %p52
    %p59 = scmp.eq.s32.totalorder %s17, 1
    %p60 = por %p58, %p59
    %p61 = scmp.ne.s32.totalorder %s53, %s56
    %p62 = scmp.eq.s32.totalorder %s17, 0
    %p63 = por %p61, %p62
    %p64 = scmp.ne.s32.totalorder %s53, %s56
    %p65 = scmp.eq.s32.totalorder %s22, 1
    %p66 = por %p64, %p65
    %p67 = scmp.ne.s32.totalorder %s56, %s57
    %p68 = scmp.eq.s32.totalorder %s22, 0
    %p69 = por %p67, %p68
    %p70 = scmp.ne.s32.totalorder %s56, %s57
    %p71 = scmp.eq.s32.totalorder %s23, 1
    %p72 = por %p70, %p71
    %p74 = scmp.ne.s32.totalorder %s57, %s73
    %p75 = scmp.eq.s32.totalorder %s23, 0
    %p76 = por %p74, %p75
    %s77 = ssub.s32 %s17, %s24
    %p78 = scmp.eq.s32.totalorder %s77, 0
    %s80 = sadd.s32 %s79, 1
    %s81 = scalar_select %p78, %s79, %s80
    %p84 = pneg %p78
    %p85 = scmp.eq.s32.totalorder %s17, 1
    %p86 = por %p84, %p85
    %p87 = scmp.ne.s32.totalorder %s79, %s82
    %p88 = scmp.eq.s32.totalorder %s17, 0
    %p89 = por %p87, %p88
    %p90 = scmp.ne.s32.totalorder %s79, %s82
    %p91 = scmp.eq.s32.totalorder %s22, 1
    %p92 = por %p90, %p91
    %p93 = scmp.ne.s32.totalorder %s82, %s83
    %p94 = scmp.eq.s32.totalorder %s22, 0
    %p95 = por %p93, %p94
    %p96 = scmp.ne.s32.totalorder %s82, %s83
    %p97 = scmp.eq.s32.totalorder %s23, 1
    %p98 = por %p96, %p97
    %p100 = scmp.ne.s32.totalorder %s83, %s99
    %p101 = scmp.eq.s32.totalorder %s23, 0
    %p102 = por %p100, %p101
    %s103 = ssub.s32 %s17, %s24
    %p104 = scmp.eq.s32.totalorder %s103, 0
    %s106 = sadd.s32 %s105, 1
    %s107 = scalar_select %p104, %s105, %s106
    %p110 = pneg %p104
    %p111 = scmp.eq.s32.totalorder %s17, 1
    %p112 = por %p110, %p111
    %p113 = scmp.ne.s32.totalorder %s105, %s108
    %p114 = scmp.eq.s32.totalorder %s17, 0
    %p115 = por %p113, %p114
    %p116 = scmp.ne.s32.totalorder %s105, %s108
    %p117 = scmp.eq.s32.totalorder %s22, 1
    %p118 = por %p116, %p117
    %p119 = scmp.ne.s32.totalorder %s108, %s109
    %p120 = scmp.eq.s32.totalorder %s22, 0
    %p121 = por %p119, %p120
    %p122 = scmp.ne.s32.totalorder %s108, %s109
    %p123 = scmp.eq.s32.totalorder %s23, 1
    %p124 = por %p122, %p123
    %p126 = scmp.ne.s32.totalorder %s109, %s125
    %p127 = scmp.eq.s32.totalorder %s23, 0
    %p128 = por %p126, %p127
    %s130 = sadd.s32 %s129, 1
    %p133 = scmp.eq.s32.totalorder %s17, 1
    %p134 = scmp.ne.s32.totalorder %s129, %s131
    %p135 = scmp.eq.s32.totalorder %s17, 0
    %p136 = por %p134, %p135
    %p137 = scmp.ne.s32.totalorder %s129, %s131
    %p138 = scmp.eq.s32.totalorder %s22, 1
    %p139 = por %p137, %p138
    %p140 = scmp.ne.s32.totalorder %s131, %s132
    %p141 = scmp.eq.s32.totalorder %s22, 0
    %p142 = por %p140, %p141
    %p143 = scmp.ne.s32.totalorder %s131, %s132
    %p144 = scmp.eq.s32.totalorder %s23, 1
    %p145 = por %p143, %p144
    %p147 = scmp.ne.s32.totalorder %s132, %s146
    %p148 = scmp.eq.s32.totalorder %s23, 0
    %p149 = por %p147, %p148
    %s151 = sadd.s32 %s150, 1
    %p154 = scmp.eq.s32.totalorder %s17, 1
    %p155 = scmp.ne.s32.totalorder %s150, %s152
    %p156 = scmp.eq.s32.totalorder %s17, 0
    %p157 = por %p155, %p156
    %p158 = scmp.ne.s32.totalorder %s150, %s152
    %p159 = scmp.eq.s32.totalorder %s22, 1
    %p160 = por %p158, %p159
    %p161 = scmp.ne.s32.totalorder %s152, %s153
    %p162 = scmp.eq.s32.totalorder %s22, 0
    %p163 = por %p161, %p162
    %p164 = scmp.ne.s32.totalorder %s152, %s153
    %p165 = scmp.eq.s32.totalorder %s23, 1
    %p166 = por %p164, %p165
    %p168 = scmp.ne.s32.totalorder %s153, %s167
    %p169 = scmp.eq.s32.totalorder %s23, 0
    %p170 = por %p168, %p169
    %s172 = sadd.s32 %s171, 1
    %p175 = scmp.eq.s32.totalorder %s17, 1
    %p176 = scmp.ne.s32.totalorder %s171, %s173
    %p177 = scmp.eq.s32.totalorder %s17, 0
    %p178 = por %p176, %p177
    %p179 = scmp.ne.s32.totalorder %s171, %s173
    %p180 = scmp.eq.s32.totalorder %s22, 1
    %p181 = por %p179, %p180
    %p182 = scmp.ne.s32.totalorder %s173, %s174
    %p183 = scmp.eq.s32.totalorder %s22, 0
    %p184 = por %p182, %p183
    %p185 = scmp.ne.s32.totalorder %s173, %s174
    %p186 = scmp.eq.s32.totalorder %s23, 1
    %p187 = por %p185, %p186
    %p189 = scmp.ne.s32.totalorder %s174, %s188
    %p190 = scmp.eq.s32.totalorder %s23, 0
    %p191 = por %p189, %p190
    %s193 = sadd.s32 %s192, 1
    %p196 = scmp.eq.s32.totalorder %s17, 1
    %p197 = scmp.ne.s32.totalorder %s192, %s194
    %p198 = scmp.eq.s32.totalorder %s17, 0
    %p199 = por %p197, %p198
    %p200 = scmp.ne.s32.totalorder %s192, %s194
    %p201 = scmp.eq.s32.totalorder %s22, 1
    %p202 = por %p200, %p201
    %p203 = scmp.ne.s32.totalorder %s194, %s195
    %p204 = scmp.eq.s32.totalorder %s22, 0
    %p205 = por %p203, %p204
    %p206 = scmp.ne.s32.totalorder %s194, %s195
    %p207 = scmp.eq.s32.totalorder %s23, 1
    %p208 = por %p206, %p207
    %p210 = scmp.ne.s32.totalorder %s195, %s209
    %p211 = scmp.eq.s32.totalorder %s23, 0
    %p212 = por %p210, %p211
    %s214 = sadd.s32 %s213, 1
    %p217 = scmp.eq.s32.totalorder %s17, 1
    %p218 = scmp.ne.s32.totalorder %s213, %s215
    %p219 = scmp.eq.s32.totalorder %s17, 0
    %p220 = por %p218, %p219
    %p221 = scmp.ne.s32.totalorder %s213, %s215
    %p222 = scmp.eq.s32.totalorder %s22, 1
    %p223 = por %p221, %p222
    %p224 = scmp.ne.s32.totalorder %s215, %s216
    %p225 = scmp.eq.s32.totalorder %s22, 0
    %p226 = por %p224, %p225
    %p227 = scmp.ne.s32.totalorder %s215, %s216
    %p228 = scmp.eq.s32.totalorder %s23, 1
    %p229 = por %p227, %p228
    %p231 = scmp.ne.s32.totalorder %s216, %s230
    %p232 = scmp.eq.s32.totalorder %s23, 0
    %p233 = por %p231, %p232
    %s235 = sadd.s32 %s234, 1
    %p238 = scmp.eq.s32.totalorder %s17, 1
    %p239 = scmp.ne.s32.totalorder %s234, %s236
    %p240 = scmp.eq.s32.totalorder %s17, 0
    %p241 = por %p239, %p240
    %p242 = scmp.ne.s32.totalorder %s234, %s236
    %p243 = scmp.eq.s32.totalorder %s22, 1
    %p244 = por %p242, %p243
    %p245 = scmp.ne.s32.totalorder %s236, %s237
    %p246 = scmp.eq.s32.totalorder %s22, 0
    %p247 = por %p245, %p246
    %p248 = scmp.ne.s32.totalorder %s236, %s237
    %p249 = scmp.eq.s32.totalorder %s23, 1
    %p250 = por %p248, %p249
    %p252 = scmp.ne.s32.totalorder %s237, %s251
    %p253 = scmp.eq.s32.totalorder %s23, 0
    %p254 = por %p252, %p253
    %s256 = sadd.s32 %s255, 1
    %p259 = scmp.eq.s32.totalorder %s17, 1
    %p260 = scmp.ne.s32.totalorder %s255, %s257
    %p261 = scmp.eq.s32.totalorder %s17, 0
    %p262 = por %p260, %p261
    %p263 = scmp.ne.s32.totalorder %s255, %s257
    %p264 = scmp.eq.s32.totalorder %s22, 1
    %p265 = por %p263, %p264
    %p266 = scmp.ne.s32.totalorder %s257, %s258
    %p267 = scmp.eq.s32.totalorder %s22, 0
    %p268 = por %p266, %p267
    %p269 = scmp.ne.s32.totalorder %s257, %s258
    %p270 = scmp.eq.s32.totalorder %s23, 1
    %p271 = por %p269, %p270
    %p273 = scmp.ne.s32.totalorder %s258, %s272
    %p274 = scmp.eq.s32.totalorder %s23, 0
    %p275 = por %p273, %p274
    %s276 = ssub.s32 %s17, %s24
    %p277 = scmp.eq.s32.totalorder %s276, 0
    %s279 = sadd.s32 %s278, 1
    %s280 = scalar_select %p277, %s278, %s279
    %p283 = pneg %p277
    %p284 = scmp.eq.s32.totalorder %s17, 1
    %p285 = por %p283, %p284
    %p286 = scmp.ne.s32.totalorder %s278, %s281
    %p287 = scmp.eq.s32.totalorder %s17, 0
    %p288 = por %p286, %p287
    %p289 = scmp.ne.s32.totalorder %s278, %s281
    %p290 = scmp.eq.s32.totalorder %s22, 1
    %p291 = por %p289, %p290
    %p292 = scmp.ne.s32.totalorder %s281, %s282
    %p293 = scmp.eq.s32.totalorder %s22, 0
    %p294 = por %p292, %p293
    %p295 = scmp.ne.s32.totalorder %s281, %s282
    %p296 = scmp.eq.s32.totalorder %s23, 1
    %p297 = por %p295, %p296
    %p299 = scmp.ne.s32.totalorder %s282, %s298
    %p300 = scmp.eq.s32.totalorder %s23, 0
    %p301 = por %p299, %p300
    %p302 = scmp.le.s32.totalorder 1, %s17
    %p303 = scmp.lt.s32.totalorder %s17, 3
    %p304 = pnand %p302, %p303
    %p305 = pneg %p304
    // Predicated region
    $region9: #{tpu_custom_call.1} parent=5 // pred_check
      _
    $region10: #{tpu_custom_call.1} parent=5 // pred_check_branch
      %307 = sbr.rel (%p304) target = $region12
    $region11: #{tpu_custom_call.1} parent=5 // pred_region
      %s308 = ssub.s32 %s17, 1
      // Predicated region
      $region13: #{tpu_custom_call.1} parent=11 // pred_check
        %p309 = pneg %p142
      $region14: #{tpu_custom_call.1} parent=11 // pred_check_branch
        %311 = sbr.rel (%p309) target = $region16
      $region15: #{tpu_custom_call.1} parent=11 // pred_region
        _
      $region16: #{tpu_custom_call.1} parent=11 // pred_fallthru
        _
      // Predicated region
      $region17: #{tpu_custom_call.1} parent=11 // pred_check
        %p312 = pneg %p163
      $region18: #{tpu_custom_call.1} parent=11 // pred_check_branch
        %314 = sbr.rel (%p312) target = $region20
      $region19: #{tpu_custom_call.1} parent=11 // pred_region
        _
      $region20: #{tpu_custom_call.1} parent=11 // pred_fallthru
        _
      // Predicated region
      $region21: #{tpu_custom_call.1} parent=11 // pred_check
        %p315 = pneg %p184
      $region22: #{tpu_custom_call.1} parent=11 // pred_check_branch
        %317 = sbr.rel (%p315) target = $region24
      $region23: #{tpu_custom_call.1} parent=11 // pred_region
        _
      $region24: #{tpu_custom_call.1} parent=11 // pred_fallthru
        _
      // Predicated region
      $region25: #{tpu_custom_call.1} parent=11 // pred_check
        %p318 = pneg %p205
      $region26: #{tpu_custom_call.1} parent=11 // pred_check_branch
        %320 = sbr.rel (%p318) target = $region28
      $region27: #{tpu_custom_call.1} parent=11 // pred_region
        _
      $region28: #{tpu_custom_call.1} parent=11 // pred_fallthru
        _
      // Predicated region
      $region29: #{tpu_custom_call.1} parent=11 // pred_check
        %p321 = pneg %p226
      $region30: #{tpu_custom_call.1} parent=11 // pred_check_branch
        %323 = sbr.rel (%p321) target = $region32
      $region31: #{tpu_custom_call.1} parent=11 // pred_region
        _
      $region32: #{tpu_custom_call.1} parent=11 // pred_fallthru
        _
      // Predicated region
      $region33: #{tpu_custom_call.1} parent=11 // pred_check
        %p324 = pneg %p247
      $region34: #{tpu_custom_call.1} parent=11 // pred_check_branch
        %326 = sbr.rel (%p324) target = $region36
      $region35: #{tpu_custom_call.1} parent=11 // pred_region
        _
      $region36: #{tpu_custom_call.1} parent=11 // pred_fallthru
        _
      // Predicated region
      $region37: #{tpu_custom_call.1} parent=11 // pred_check
        %p327 = pneg %p268
      $region38: #{tpu_custom_call.1} parent=11 // pred_check_branch
        %329 = sbr.rel (%p327) target = $region40
      $region39: #{tpu_custom_call.1} parent=11 // pred_region
        _
      $region40: #{tpu_custom_call.1} parent=11 // pred_fallthru
        _
    $region12: #{tpu_custom_call.1} parent=5 // pred_fallthru
      _
    %p330 = scmp.lt.s32.totalorder %s17, 2
    // Predicated region
    $region41: #{tpu_custom_call.1} parent=5 // pred_check
      %p331 = pneg %p330
    $region42: #{tpu_custom_call.1} parent=5 // pred_check_branch
      %333 = sbr.rel (%p331) target = $region44
    $region43: #{tpu_custom_call.1} parent=5 // pred_region
      // Predicated region
      $region45: #{tpu_custom_call.1} parent=43 // pred_check
        %p334 = pneg %p37
      $region46: #{tpu_custom_call.1} parent=43 // pred_check_branch
        %336 = sbr.rel (%p334) target = $region48
      $region47: #{tpu_custom_call.1} parent=43 // pred_region
        %p337 = scmp.lt.s32.totalorder %s17, 1
        %s338 = scalar_select %p337, %s17, 1
        %s339 = smul.addr %s338, 2
        %s340 = smul.addr %s339, 8
        %s341 = scalar_lea.vmem %s0, %s340
      $region48: #{tpu_custom_call.1} parent=43 // pred_fallthru
        _
      // Predicated region
      $region49: #{tpu_custom_call.1} parent=43 // pred_check
        %p342 = pneg %p63
      $region50: #{tpu_custom_call.1} parent=43 // pred_check_branch
        %344 = sbr.rel (%p342) target = $region52
      $region51: #{tpu_custom_call.1} parent=43 // pred_region
        %p345 = scmp.lt.s32.totalorder %s17, 1
        %s346 = scalar_select %p345, %s17, 1
        %s347 = smul.addr %s346, 8
        %s348 = scalar_lea.vmem %s1, %s347
      $region52: #{tpu_custom_call.1} parent=43 // pred_fallthru
        _
      // Predicated region
      $region53: #{tpu_custom_call.1} parent=43 // pred_check
        %p349 = pneg %p89
      $region54: #{tpu_custom_call.1} parent=43 // pred_check_branch
        %351 = sbr.rel (%p349) target = $region56
      $region55: #{tpu_custom_call.1} parent=43 // pred_region
        %p352 = scmp.lt.s32.totalorder %s17, 1
        %s353 = scalar_select %p352, %s17, 1
        %s354 = smul.addr %s353, 8
        %s355 = scalar_lea.vmem %s2, %s354
      $region56: #{tpu_custom_call.1} parent=43 // pred_fallthru
        _
      // Predicated region
      $region57: #{tpu_custom_call.1} parent=43 // pred_check
        %p356 = pneg %p115
      $region58: #{tpu_custom_call.1} parent=43 // pred_check_branch
        %358 = sbr.rel (%p356) target = $region60
      $region59: #{tpu_custom_call.1} parent=43 // pred_region
        %p359 = scmp.lt.s32.totalorder %s17, 1
        %s360 = scalar_select %p359, %s17, 1
        %s361 = smul.addr %s360, 4
        %s362 = smul.addr %s361, 8
        %s363 = scalar_lea.vmem %s3, %s362
      $region60: #{tpu_custom_call.1} parent=43 // pred_fallthru
        _
    $region44: #{tpu_custom_call.1} parent=5 // pred_fallthru
      _
    %p364 = scmp.le.s32.totalorder 1, %s17
    %p365 = scmp.lt.s32.totalorder %s17, 3
    %p366 = pnand %p364, %p365
    %p367 = pneg %p366
    // Predicated region
    $region61: #{tpu_custom_call.1} parent=5 // pred_check
      _
    $region62: #{tpu_custom_call.1} parent=5 // pred_check_branch
      %369 = sbr.rel (%p366) target = $region64
    $region63: #{tpu_custom_call.1} parent=5 // pred_region
      %s370 = ssub.s32 %s17, 1
      %p371 = scmp.lt.s32.totalorder %s22, 1
      %s372 = scalar_select %p371, %s22, 1
      %s373 = smul.addr %s372, 2
      %s374 = smul.addr %s373, 8
      %s375 = scalar_lea.vmem %s0, %s374
      %p376 = pneg %p43
      %p377 = pneg %p40
      %p378 = scmp.lt.s32.totalorder %s22, 1
      %s379 = scalar_select %p378, %s22, 1
      %s380 = smul.addr %s379, 8
      %s381 = scalar_lea.vmem %s1, %s380
      %p382 = pneg %p69
      %p383 = pneg %p66
      %p384 = scmp.lt.s32.totalorder %s22, 1
      %s385 = scalar_select %p384, %s22, 1
      %s386 = smul.addr %s385, 8
      %s387 = scalar_lea.vmem %s2, %s386
      %p388 = pneg %p95
      %p389 = pneg %p92
      %p390 = scmp.lt.s32.totalorder %s22, 1
      %s391 = scalar_select %p390, %s22, 1
      %s392 = smul.addr %s391, 4
      %s393 = smul.addr %s392, 8
      %s394 = scalar_lea.vmem %s3, %s393
      %p395 = pneg %p121
      %p396 = pneg %p118
      %p397 = pneg %p142
      %p398 = pneg %p139
      %p399 = pneg %p163
      %p400 = pneg %p160
      %p401 = pneg %p184
      %p402 = pneg %p181
      %p403 = pneg %p205
      %p404 = pneg %p202
      %p405 = pneg %p226
      %p406 = pneg %p223
      %p407 = pneg %p247
      %p408 = pneg %p244
      %p409 = pneg %p268
      %p410 = pneg %p265
      %p411 = pneg %p294
      %p412 = pneg %p291
      %p413 = scmp.lt.s32.totalorder %s22, 1
      %s414 = scalar_select %p413, %s22, 1
      %s415 = smul.addr %s414, 8
      %s416 = scalar_lea.vmem %s11, %s415
      %p417 = scmp.lt.s32.totalorder %s22, 1
      %s418 = scalar_select %p417, %s22, 1
      %s419 = smul.addr %s418, 2
      %s420 = smul.addr %s419, 8
      %s421 = scalar_lea.vmem %s0, %s420
      %p422 = scmp.lt.s32.totalorder %s22, 1
      %s423 = scalar_select %p422, %s22, 1
      %s424 = smul.addr %s423, 8
      %s425 = scalar_lea.vmem %s1, %s424
      %p426 = scmp.lt.s32.totalorder %s22, 1
      %s427 = scalar_select %p426, %s22, 1
      %s428 = smul.addr %s427, 8
      %s429 = scalar_lea.vmem %s2, %s428
      %p430 = scmp.lt.s32.totalorder %s22, 1
      %s431 = scalar_select %p430, %s22, 1
      %s432 = smul.addr %s431, 4
      %s433 = smul.addr %s432, 8
      %s434 = scalar_lea.vmem %s3, %s433
      %p435 = scmp.lt.s32.totalorder %s22, 1
      %s436 = scalar_select %p435, %s22, 1
      %s437 = smul.addr %s436, 8
      %s438 = scalar_lea.vmem %s11, %s437
      %v439 = vld [vmem:[%s421] sm:$0xff]
      %v440 = vld [vmem:[%s421 + $0x8] sm:$0xff]
      %v441 = vld [vmem:[%s4] sm:$0xff]
      %v442 = vld [vmem:[%s4 + $0x8] sm:$0xff]
      %v443 = vld [vmem:[%s4 + $0x10] sm:$0xff]
      %v444 = vld [vmem:[%s4 + $0x18] sm:$0xff]
      %v445 = vld [vmem:[%s4 + $0x20] sm:$0xff]
      %v446 = vld [vmem:[%s4 + $0x28] sm:$0xff]
      %v447 = vld [vmem:[%s4 + $0x30] sm:$0xff]
      %v448 = vld [vmem:[%s4 + $0x38] sm:$0xff]
      %v449 = vld [vmem:[%s4 + $0x40] sm:$0xff]
      %v450 = vld [vmem:[%s4 + $0x48] sm:$0xff]
      %v451 = vld [vmem:[%s4 + $0x50] sm:$0xff]
      %v452 = vld [vmem:[%s4 + $0x58] sm:$0xff]
      %v453 = vld [vmem:[%s4 + $0x60] sm:$0xff]
      %v454 = vld [vmem:[%s4 + $0x68] sm:$0xff]
      %v455 = vld [vmem:[%s4 + $0x70] sm:$0xff]
      %v456 = vld [vmem:[%s4 + $0x78] sm:$0xff]
      %v457 = vld [vmem:[%s4 + $0x80] sm:$0xff]
      %v458 = vld [vmem:[%s4 + $0x88] sm:$0xff]
      %v459 = vld [vmem:[%s4 + $0x90] sm:$0xff]
      %v460 = vld [vmem:[%s4 + $0x98] sm:$0xff]
      %v461 = vld [vmem:[%s4 + $0xa0] sm:$0xff]
      %v462 = vld [vmem:[%s4 + $0xa8] sm:$0xff]
      %v463 = vld [vmem:[%s4 + $0xb0] sm:$0xff]
      %v464 = vld [vmem:[%s4 + $0xb8] sm:$0xff]
      %v465 = vld [vmem:[%s425] sm:$0xff]
      %v466 = vld [vmem:[%s5] sm:$0x7]
      %vm467 = vcmask 23552
      %v469 = vsel %vm467, %v465, 0
      %vm471 = vcmask 1042432
      %v473 = vsel %vm471, %v466, 0
      %475 = vmatpush.msra.mxu0 0.0
      %476 = vmatpush.msra.mxu0 0.0
      %477 = vmatpush.msra.mxu0 0.0
      %478 = vmatpush.msra.mxu0 0.0
      %479 = vmatpush.msra.mxu0 0.0
      %480 = vmatpush.msra.mxu0 0.0
      %481 = vmatpush.msra.mxu0 0.0
      %482 = vmatpush.msra.mxu0 0.0
      %483 = vmatpush.msra.mxu0 0.0
      %484 = vmatpush.msra.mxu0 0.0
      %485 = vmatpush.msra.mxu0 0.0
      %486 = vmatpush.msra.mxu0 0.0
      %487 = vmatpush.msra.mxu0 0.0
      %488 = vmatpush.msra.mxu0 0.0
      %489 = vmatpush.msra.mxu0 0.0
      %490 = vmatpush.msra.mxu0 %v473
      %491 = vmatmul.f32.gmra.mxu0 %v469
      %v492 = vpop.f32.mrf.mxu0
      %v493 = vadd.f32 0.0, %v492
      %494 = vdwg.mxu0
      %vm495 = vcmask 523264
      %v497 = vsel %vm495, %v440, 0
      %499 = vmatpush.msra.mxu0 %v456
      %500 = vmatpush.msra.mxu0 %v455
      %501 = vmatpush.msra.mxu0 %v454
      %502 = vmatpush.msra.mxu0 %v453
      %503 = vmatpush.msra.mxu0 %v452
      %504 = vmatpush.msra.mxu0 %v451
      %505 = vmatpush.msra.mxu0 %v450
      %506 = vmatpush.msra.mxu0 %v449
      %507 = vmatpush.msra.mxu0 %v448
      %508 = vmatpush.msra.mxu0 %v447
      %509 = vmatpush.msra.mxu0 %v446
      %510 = vmatpush.msra.mxu0 %v445
      %511 = vmatpush.msra.mxu0 %v444
      %512 = vmatpush.msra.mxu0 %v443
      %513 = vmatpush.msra.mxu0 %v442
      %514 = vmatpush.msra.mxu0 %v441
      %515 = vmatmul.f32.gmra.mxu0 %v439
      %v516 = vpop.f32.mrf.mxu0
      %v517 = vadd.f32 %v493, %v516
      %518 = vdwg.mxu0
      %519 = vmatpush.msra.mxu0 0.0
      %520 = vmatpush.msra.mxu0 0.0
      %521 = vmatpush.msra.mxu0 0.0
      %522 = vmatpush.msra.mxu0 0.0
      %523 = vmatpush.msra.mxu0 0.0
      %524 = vmatpush.msra.mxu0 0.0
      %525 = vmatpush.msra.mxu0 0.0
      %526 = vmatpush.msra.mxu0 0.0
      %527 = vmatpush.msra.mxu0 %v464
      %528 = vmatpush.msra.mxu0 %v463
      %529 = vmatpush.msra.mxu0 %v462
      %530 = vmatpush.msra.mxu0 %v461
      %531 = vmatpush.msra.mxu0 %v460
      %532 = vmatpush.msra.mxu0 %v459
      %533 = vmatpush.msra.mxu0 %v458
      %534 = vmatpush.msra.mxu0 %v457
      %535 = vmatmul.f32.gmra.mxu0 %v497
      %v536 = vpop.f32.mrf.mxu0
      %v537 = vadd.f32 %v517, %v536
      %538 = vdwg.mxu0
      %v539 = vld [vmem:[%s6] sm:$0x1]
      %v541 = vperm.slane %v539, 0
      %v543 = vadd.f32 %v537, %v541
      %v544 = vld [vmem:[%s434] sm:$0xff]
      %v545 = vld [vmem:[%s434 + $0x8] sm:$0xff]
      %v546 = vld [vmem:[%s434 + $0x10] sm:$0xff]
      %v547 = vld [vmem:[%s434 + $0x18] sm:$0xff]
      %v548 = vld [vmem:[%s7] sm:$0xff]
      %v549 = vld [vmem:[%s7 + $0x8] sm:$0xff]
      %v550 = vld [vmem:[%s7 + $0x10] sm:$0xff]
      %v551 = vld [vmem:[%s7 + $0x18] sm:$0xff]
      %v552 = vld [vmem:[%s7 + $0x20] sm:$0xff]
      %v553 = vld [vmem:[%s7 + $0x28] sm:$0xff]
      %v554 = vld [vmem:[%s7 + $0x30] sm:$0xff]
      %v555 = vld [vmem:[%s7 + $0x38] sm:$0xff]
      %v556 = vld [vmem:[%s7 + $0x40] sm:$0xff]
      %v557 = vld [vmem:[%s7 + $0x48] sm:$0xff]
      %v558 = vld [vmem:[%s7 + $0x50] sm:$0xff]
      %v559 = vld [vmem:[%s7 + $0x58] sm:$0xff]
      %v560 = vld [vmem:[%s7 + $0x60] sm:$0xff]
      %v561 = vld [vmem:[%s7 + $0x68] sm:$0xff]
      %v562 = vld [vmem:[%s7 + $0x70] sm:$0xff]
      %v563 = vld [vmem:[%s7 + $0x78] sm:$0xff]
      %v564 = vld [vmem:[%s7 + $0x80] sm:$0xff]
      %v565 = vld [vmem:[%s7 + $0x88] sm:$0xff]
      %v566 = vld [vmem:[%s7 + $0x90] sm:$0xff]
      %v567 = vld [vmem:[%s7 + $0x98] sm:$0xff]
      %v568 = vld [vmem:[%s7 + $0xa0] sm:$0xff]
      %v569 = vld [vmem:[%s7 + $0xa8] sm:$0xff]
      %v570 = vld [vmem:[%s7 + $0xb0] sm:$0xff]
      %v571 = vld [vmem:[%s7 + $0xb8] sm:$0xff]
      %v572 = vld [vmem:[%s7 + $0xc0] sm:$0xff]
      %v573 = vld [vmem:[%s7 + $0xc8] sm:$0xff]
      %v574 = vld [vmem:[%s7 + $0xd0] sm:$0xff]
      %v575 = vld [vmem:[%s7 + $0xd8] sm:$0xff]
      %v576 = vld [vmem:[%s7 + $0xe0] sm:$0xff]
      %v577 = vld [vmem:[%s7 + $0xe8] sm:$0xff]
      %v578 = vld [vmem:[%s7 + $0xf0] sm:$0xff]
      %v579 = vld [vmem:[%s7 + $0xf8] sm:$0xff]
      %v580 = vld [vmem:[%s7 + $0x100] sm:$0xff]
      %v581 = vld [vmem:[%s7 + $0x108] sm:$0xff]
      %v582 = vld [vmem:[%s7 + $0x110] sm:$0xff]
      %v583 = vld [vmem:[%s7 + $0x118] sm:$0xff]
      %v584 = vld [vmem:[%s7 + $0x120] sm:$0xff]
      %v585 = vld [vmem:[%s7 + $0x128] sm:$0xff]
      %v586 = vld [vmem:[%s7 + $0x130] sm:$0xff]
      %v587 = vld [vmem:[%s7 + $0x138] sm:$0xff]
      %v588 = vld [vmem:[%s7 + $0x140] sm:$0xff]
      %v589 = vld [vmem:[%s7 + $0x148] sm:$0xff]
      %v590 = vld [vmem:[%s7 + $0x150] sm:$0xff]
      %v591 = vld [vmem:[%s7 + $0x158] sm:$0xff]
      %v592 = vld [vmem:[%s7 + $0x160] sm:$0xff]
      %v593 = vld [vmem:[%s7 + $0x168] sm:$0xff]
      %v594 = vld [vmem:[%s7 + $0x170] sm:$0xff]
      %v595 = vld [vmem:[%s7 + $0x178] sm:$0xff]
      %v596 = vld [vmem:[%s7 + $0x180] sm:$0xff]
      %v597 = vld [vmem:[%s7 + $0x188] sm:$0xff]
      %v598 = vld [vmem:[%s7 + $0x190] sm:$0xff]
      %v599 = vld [vmem:[%s7 + $0x198] sm:$0xff]
      %v600 = vld [vmem:[%s7 + $0x1a0] sm:$0xff]
      %v601 = vld [vmem:[%s7 + $0x1a8] sm:$0xff]
      %v602 = vld [vmem:[%s7 + $0x1b0] sm:$0xff]
      %v603 = vld [vmem:[%s7 + $0x1b8] sm:$0xff]
      %v604 = vld [vmem:[%s7 + $0x1c0] sm:$0xff]
      %v605 = vld [vmem:[%s7 + $0x1c8] sm:$0xff]
      %v606 = vld [vmem:[%s8] sm:$0x1]
      %v608 = vperm.slane %v606, 0
      %vm610 = vcmask 654336
      %v612 = vsel %vm610, %v547, 0
      %614 = vmatpush.msra.mxu0 %v563
      %615 = vmatpush.msra.mxu0 %v562
      %616 = vmatpush.msra.mxu0 %v561
      %617 = vmatpush.msra.mxu0 %v560
      %618 = vmatpush.msra.mxu0 %v559
      %619 = vmatpush.msra.mxu0 %v558
      %620 = vmatpush.msra.mxu0 %v557
      %621 = vmatpush.msra.mxu0 %v556
      %622 = vmatpush.msra.mxu0 %v555
      %623 = vmatpush.msra.mxu0 %v554
      %624 = vmatpush.msra.mxu0 %v553
      %625 = vmatpush.msra.mxu0 %v552
      %626 = vmatpush.msra.mxu0 %v551
      %627 = vmatpush.msra.mxu0 %v550
      %628 = vmatpush.msra.mxu0 %v549
      %629 = vmatpush.msra.mxu0 %v548
      %630 = vmatmul.f32.gmra.mxu0 %v544
      %v631 = vpop.f32.mrf.mxu0
      %v632 = vadd.f32 %v608, %v631
      %633 = vdwg.mxu0
      %634 = vmatpush.msra.mxu0 %v579
      %635 = vmatpush.msra.mxu0 %v578
      %636 = vmatpush.msra.mxu0 %v577
      %637 = vmatpush.msra.mxu0 %v576
      %638 = vmatpush.msra.mxu0 %v575
      %639 = vmatpush.msra.mxu0 %v574
      %640 = vmatpush.msra.mxu0 %v573
      %641 = vmatpush.msra.mxu0 %v572
      %642 = vmatpush.msra.mxu0 %v571
      %643 = vmatpush.msra.mxu0 %v570
      %644 = vmatpush.msra.mxu0 %v569
      %645 = vmatpush.msra.mxu0 %v568
      %646 = vmatpush.msra.mxu0 %v567
      %647 = vmatpush.msra.mxu0 %v566
      %648 = vmatpush.msra.mxu0 %v565
      %649 = vmatpush.msra.mxu0 %v564
      %650 = vmatmul.f32.gmra.mxu0 %v545
      %v651 = vpop.f32.mrf.mxu0
      %v652 = vadd.f32 %v632, %v651
      %653 = vdwg.mxu0
      %654 = vmatpush.msra.mxu0 %v595
      %655 = vmatpush.msra.mxu0 %v594
      %656 = vmatpush.msra.mxu0 %v593
      %657 = vmatpush.msra.mxu0 %v592
      %658 = vmatpush.msra.mxu0 %v591
      %659 = vmatpush.msra.mxu0 %v590
      %660 = vmatpush.msra.mxu0 %v589
      %661 = vmatpush.msra.mxu0 %v588
      %662 = vmatpush.msra.mxu0 %v587
      %663 = vmatpush.msra.mxu0 %v586
      %664 = vmatpush.msra.mxu0 %v585
      %665 = vmatpush.msra.mxu0 %v584
      %666 = vmatpush.msra.mxu0 %v583
      %667 = vmatpush.msra.mxu0 %v582
      %668 = vmatpush.msra.mxu0 %v581
      %669 = vmatpush.msra.mxu0 %v580
      %670 = vmatmul.f32.gmra.mxu0 %v546
      %v671 = vpop.f32.mrf.mxu0
      %v672 = vadd.f32 %v652, %v671
      %673 = vdwg.mxu0
      %674 = vmatpush.msra.mxu0 0.0
      %675 = vmatpush.msra.mxu0 0.0
      %676 = vmatpush.msra.mxu0 0.0
      %677 = vmatpush.msra.mxu0 0.0
      %678 = vmatpush.msra.mxu0 0.0
      %679 = vmatpush.msra.mxu0 0.0
      %680 = vmatpush.msra.mxu0 %v605
      %681 = vmatpush.msra.mxu0 %v604
      %682 = vmatpush.msra.mxu0 %v603
      %683 = vmatpush.msra.mxu0 %v602
      %684 = vmatpush.msra.mxu0 %v601
      %685 = vmatpush.msra.mxu0 %v600
      %686 = vmatpush.msra.mxu0 %v599
      %687 = vmatpush.msra.mxu0 %v598
      %688 = vmatpush.msra.mxu0 %v597
      %689 = vmatpush.msra.mxu0 %v596
      %690 = vmatmul.f32.gmra.mxu0 %v612
      %v691 = vpop.f32.mrf.mxu0
      %v692 = vadd.f32 %v672, %v691
      %693 = vdwg.mxu0
      %v694 = vld [vmem:[%s429] sm:$0xff]
      %v695 = vmul.f32 %v694, %v543
      %v696 = vsub.f32 1.0, %v694
      %v697 = vmul.f32 %v696, %v692
      %v698 = vadd.f32 %v695, %v697
      %v699 = vld [vmem:[%s9] sm:$0xff]
      %v700 = vld [vmem:[%s9 + $0x8] sm:$0xff]
      %v701 = vld [vmem:[%s9 + $0x10] sm:$0xff]
      %v702 = vld [vmem:[%s9 + $0x18] sm:$0xff]
      %v703 = vld [vmem:[%s10] sm:$0x1]
      %v705 = vperm.slane %v703, 0
      %vm707 = vcmask 261120
      %v709 = vsel %vm707, %v698, 0
      %711 = vmatpush.msra.mxu0 0.0
      %712 = vmatpush.msra.mxu0 0.0
      %713 = vmatpush.msra.mxu0 0.0
      %714 = vmatpush.msra.mxu0 0.0
      %715 = vmatpush.msra.mxu0 0.0
      %716 = vmatpush.msra.mxu0 0.0
      %717 = vmatpush.msra.mxu0 0.0
      %718 = vmatpush.msra.mxu0 0.0
      %719 = vmatpush.msra.mxu0 0.0
      %720 = vmatpush.msra.mxu0 0.0
      %721 = vmatpush.msra.mxu0 0.0
      %722 = vmatpush.msra.mxu0 0.0
      %723 = vmatpush.msra.mxu0 %v702
      %724 = vmatpush.msra.mxu0 %v701
      %725 = vmatpush.msra.mxu0 %v700
      %726 = vmatpush.msra.mxu0 %v699
      %727 = vmatmul.f32.gmra.mxu0 %v709
      %v728 = vpop.f32.mrf.mxu0
      %v729 = vadd.f32 %v705, %v728
      %730 = vdwg.mxu0
      %vm731 = vcmask 15360
      %732 = vst.msk [vmem:[%s438] sm:$0xff] %vm731, %v729
      %p733 = scmp.lt.s32.totalorder %s22, 1
      %s734 = scalar_select %p733, %s22, 1
      %s735 = smul.addr %s734, 8
      %s736 = scalar_lea.vmem %s11, %s735
      // Predicated region
      $region65: #{tpu_custom_call.1} parent=63 // pred_check
        %p737 = pneg %p291
      $region66: #{tpu_custom_call.1} parent=63 // pred_check_branch
        %739 = sbr.rel (%p737) target = $region68
      $region67: #{tpu_custom_call.1} parent=63 // pred_region
        _
      $region68: #{tpu_custom_call.1} parent=63 // pred_fallthru
        _
    $region64: #{tpu_custom_call.1} parent=5 // pred_fallthru
      _
    %p740 = scmp.le.s32.totalorder 2, %s17
    // Predicated region
    $region69: #{tpu_custom_call.1} parent=5 // pred_check
      %p741 = pneg %p740
    $region70: #{tpu_custom_call.1} parent=5 // pred_check_branch
      %743 = sbr.rel (%p741) target = $region72
    $region71: #{tpu_custom_call.1} parent=5 // pred_region
      %s744 = ssub.s32 %s17, 2
      // Predicated region
      $region73: #{tpu_custom_call.1} parent=71 // pred_check
        %p745 = pneg %p297
      $region74: #{tpu_custom_call.1} parent=71 // pred_check_branch
        %747 = sbr.rel (%p745) target = $region76
      $region75: #{tpu_custom_call.1} parent=71 // pred_region
        %p748 = scmp.lt.s32.totalorder %s23, 1
        %s749 = scalar_select %p748, %s23, 1
        %s750 = smul.addr %s749, 8
        %s751 = scalar_lea.vmem %s11, %s750
      $region76: #{tpu_custom_call.1} parent=71 // pred_fallthru
        _
    $region72: #{tpu_custom_call.1} parent=5 // pred_fallthru
      _
  $region6: #{tpu_custom_call.1} parent=0 // loop_footer
    %s21 = sadd.s32 1, %s17
  $region7: #{tpu_custom_call.1} parent=0 // loop_footer_branch
    %16 = sbr.rel target = $region3
  $region8: #{tpu_custom_call.1} parent=0 // loop_exit
    _

</llo_original>
